<compile_context>
chip_gen: v5e
topology: v5e:2x2
jax: 0.10.0
libtpu: 0.0.40
codegen_flags: <defaults>
</compile_context>

<pallas_src>
import functools

import jax
import jax.numpy as jnp
from jax.experimental import pallas as pl
from jax.experimental.pallas import tpu as pltpu


def _round_up(a, b):
    return (a + b - 1) // b * b


def _triplet_semihard_kernel(xr_ref, xc_ref, sqr_ref, sqc_ref, tr_ref, tc_ref,
                             out_ref, pos_sq_acc, neg_sq_acc,
                             *, n, tm, margin, gram_dtype):
    # xr_ref: (tm, Cp) f32   row block of embeddings
    # xc_ref: (tn, Cp) f32   column block of embeddings
    # sqr_ref: (tm, 1) f32   precomputed |x_i|^2 for the row block
    # sqc_ref: (1, tn) f32   precomputed |x_j|^2 for the column block (+inf pad)
    # tr_ref: (tm, 1)  i32   row labels
    # tc_ref: (1, tn)  i32   column labels (sentinel for padded columns)
    # out_ref: (1, 1) f32 in SMEM — partial hinge sum for this row tile
    # pos_sq_acc / neg_sq_acc: (tm, 1) f32 VMEM scratch (running max/min dist^2)

    # Grid scalars are read ONLY at the top level of the kernel; calling
    # pl.program_id inside a pl.when body breaks lowering (previous failure).
    i = pl.program_id(0)
    j = pl.program_id(1)
    last_j = pl.num_programs(1) - 1

    @pl.when(j == 0)
    def _init():
        pos_sq_acc[...] = jnp.full_like(pos_sq_acc, -jnp.inf)
        neg_sq_acc[...] = jnp.full_like(neg_sq_acc, jnp.inf)

    xr = xr_ref[...]                                            # (tm, Cp)
    xc = xc_ref[...]                                            # (tn, Cp)
    if gram_dtype != jnp.float32:
        # Optional bf16 Gram (only worthwhile when the MXU is the binding unit,
        # i.e. large C).  Norms stay f32.
        xr = xr.astype(gram_dtype)
        xc = xc.astype(gram_dtype)

    # Gram tile on the MXU; contract last dims of both operands so no explicit
    # (Cp, tn) transpose of xc is materialized in VMEM.
    gram = jax.lax.dot_general(
        xr, xc,
        dimension_numbers=(((1,), (1,)), ((), ())),
        preferred_element_type=jnp.float32)                     # (tm, tn)

    # clamp(min=1e-16) as in the reference; stay in squared-distance space.
    # Padded columns: sqc = +inf and Gram contribution is exactly 0 (zero-padded
    # x), so dist_sq = +inf, never NaN.
    dist_sq = jnp.maximum(sqr_ref[...] + sqc_ref[...] - 2.0 * gram, 1e-16)

    same_id = tr_ref[...] == tc_ref[...]                        # (tm, tn) bool
    # Padded columns have a sentinel label -> same_id False -> excluded from the
    # positive max; their +inf dist_sq can never win the negative min.
    pos_cand = jnp.where(same_id, dist_sq, -jnp.inf)
    neg_cand = jnp.where(same_id, jnp.inf, dist_sq)

    pos_sq_acc[...] = jnp.maximum(pos_sq_acc[...],
                                  jnp.max(pos_cand, axis=-1, keepdims=True))
    neg_sq_acc[...] = jnp.minimum(neg_sq_acc[...],
                                  jnp.min(neg_cand, axis=-1, keepdims=True))

    @pl.when(j == last_j)
    def _finalize():
        # Only 2*tm sqrts on the EUP (sqrt is monotonic, so max/min commute).
        pos_max = jnp.sqrt(jnp.maximum(pos_sq_acc[...], 1e-16))
        # A row with no negatives in the batch gets neg_min = +inf -> hinge 0,
        # matching the reference's "+1e6 fill" behaviour for sane embeddings.
        neg_min = jnp.sqrt(jnp.maximum(neg_sq_acc[...], 1e-16))
        hinge = jnp.maximum(pos_max - neg_min + margin, 0.0)    # (tm, 1)
        # Mask padded rows (runs once per row tile, not in the hot loop).
        row_idx = i * tm + jax.lax.broadcasted_iota(jnp.int32, (tm, 1), 0)
        hinge = jnp.where(row_idx < n, hinge, 0.0)
        out_ref[0, 0] = jnp.sum(hinge)


def _default_tiles(n):
    # Keep >=2 row tiles for small batches so both v7x TensorCores get work;
    # widen the column tile for large N to amortize per-step overhead.
    if n <= 256:
        return 128, 128
    if n <= 1024:
        return 256, 256
    return 256, 512


def triplet_semihard_loss(x, target, *, margin=0.0, tm=None, tn=None,
                          use_bf16_gram=False):
    """x: (N, C) float, target: (N,) int labels -> scalar float32 loss."""
    x = jnp.asarray(x, jnp.float32)
    n, c = x.shape
    t = jnp.asarray(target).astype(jnp.int32)

    dtm, dtn = _default_tiles(n)
    tm = dtm if tm is None else tm
    tn = dtn if tn is None else tn

    c_pad = _round_up(c, 128)           # fill the MXU K dimension
    n_pad_r = _round_up(n, tm)
    n_pad_c = _round_up(n, tn)
    n_pad = max(n_pad_r, n_pad_c)

    x_pad = jnp.pad(x, ((0, n_pad - n), (0, c_pad - c)))   # zero padding (needed
    x_rows = x_pad[:n_pad_r]                               # for the +inf trick)
    x_cols = x_pad[:n_pad_c]

    # Precomputed squared norms (hoisted out of the kernel's hot loop).
    sq = jnp.sum(x * x, axis=1)                                 # (n,)
    sq_r = jnp.pad(sq, (0, n_pad_r - n)).reshape(n_pad_r, 1)    # padded rows: 0
    if n_pad_c > n:
        sq_c = jnp.concatenate(
            [sq, jnp.full((n_pad_c - n,), jnp.inf, jnp.float32)])
    else:
        sq_c = sq
    sq_c = sq_c.reshape(1, n_pad_c)

    # Labels: padded columns get a sentinel that cannot equal any real label
    # (min(label) - 1; labels are int per the reference's target.int()).
    t_row = jnp.pad(t, (0, n_pad_r - n)).reshape(n_pad_r, 1)
    if n_pad_c > n:
        sentinel = jnp.min(t) - 1
        t_col = jnp.concatenate(
            [t, jnp.full((n_pad_c - n,), sentinel, dtype=jnp.int32)])
    else:
        t_col = t
    t_col = t_col.reshape(1, n_pad_c)

    grid = (n_pad_r // tm, n_pad_c // tn)

    kernel = functools.partial(
        _triplet_semihard_kernel, n=n, tm=tm, margin=float(margin),
        gram_dtype=jnp.bfloat16 if use_bf16_gram else jnp.float32)

    # Bytes: row tiles streamed once, column tiles re-streamed once per row tile.
    cost = pl.CostEstimate(
        flops=2 * n_pad_r * n_pad_c * c_pad,
        transcendentals=2 * n_pad_r,
        bytes_accessed=(n_pad_r * c_pad * 4
                        + grid[0] * n_pad_c * c_pad * 4
                        + 8 * (n_pad_r + n_pad_c)
                        + grid[0] * 4),
    )

    # Raise scoped VMEM only when the working set needs it (v5e default 16 MiB,
    # v6e 32 MiB).  TODO(synk): on v7x (64 MiB physical) cap nearer 48 MiB and
    # K-tile the feature dim for very large C instead of raising the limit.
    est_vmem = 4 * (2 * (tm + tn) * c_pad + 6 * tm * tn + 16 * (tm + tn))
    params = dict(dimension_semantics=("parallel", "arbitrary"))
    if est_vmem > 24 * (1 << 20):
        params["vmem_limit_bytes"] = int(min(96 * (1 << 20),
                                             est_vmem + (16 << 20)))

    partial_sums = pl.pallas_call(
        kernel,
        out_shape=jax.ShapeDtypeStruct((grid[0], 1), jnp.float32),
        grid=grid,
        in_specs=[
            pl.BlockSpec((tm, c_pad), lambda i, j: (i, 0)),   # x, row tile
            # TODO(synk): add pipeline_mode=pl.Buffered(3) on the column stream
            # if large-C profiling shows exposed DMA.
            pl.BlockSpec((tn, c_pad), lambda i, j: (j, 0)),   # x, column tile
            pl.BlockSpec((tm, 1), lambda i, j: (i, 0)),       # |x|^2 rows
            pl.BlockSpec((1, tn), lambda i, j: (0, j)),       # |x|^2 cols (+inf)
            pl.BlockSpec((tm, 1), lambda i, j: (i, 0)),       # labels (rows)
            pl.BlockSpec((1, tn), lambda i, j: (0, j)),       # labels (cols)
        ],
        out_specs=pl.BlockSpec((1, 1), lambda i, j: (i, 0),
                               memory_space=pltpu.MemorySpace.SMEM),
        scratch_shapes=[
            pltpu.VMEM((tm, 1), jnp.float32),   # running max of positive dist^2
            pltpu.VMEM((tm, 1), jnp.float32),   # running min of negative dist^2
        ],
        compiler_params=pltpu.CompilerParams(**params),
        cost_estimate=cost,
    )(x_rows, x_cols, sq_r, sq_c, t_row, t_col)

    # size_average=True -> mean over the N (unpadded) rows.
    return jnp.sum(partial_sums) / n


def _reference_loss(x, target, margin=0.0):
    """Pure-JAX reference mirroring the PyTorch module exactly."""
    x = x.astype(jnp.float32)
    t = target.astype(jnp.int32)
    same_id = (t[:, None] == t[None, :]).astype(jnp.float32)
    neg_mask = 1.0 - same_id
    sq = jnp.sum(x * x, axis=1, keepdims=True)
    dist_sq = sq + sq.T - 2.0 * (x @ x.T)
    dist = jnp.sqrt(jnp.maximum(dist_sq, 1e-16))
    pos_max = jnp.max(dist - 1.0e6 * (1.0 - same_id), axis=-1)
    neg_min = jnp.min(dist + 1.0e6 * (1.0 - neg_mask), axis=-1)
    return jnp.mean(jnp.maximum(pos_max - neg_min + margin, 0.0))


if __name__ == "__main__":
    key = jax.random.PRNGKey(0)
    k1, k2, k3 = jax.random.split(key, 3)

    # Test 1: small shapes matching the module interface (N, C) = (8, 32).
    x1 = jax.random.normal(k1, (8, 32), dtype=jnp.float32)
    t1 = jnp.array([0, 0, 1, 1, 2, 2, 3, 3], dtype=jnp.int32)
    loss1 = jax.block_until_ready(triplet_semihard_loss(x1, t1))
    ref1 = _reference_loss(x1, t1)
    assert jnp.allclose(loss1, ref1, rtol=1e-4, atol=1e-4), (loss1, ref1)

    # Test 2: exercises N/C padding and the multi-tile (2x2) accumulator path.
    x2 = jax.random.normal(k2, (200, 48), dtype=jnp.float32)
    t2 = jax.random.randint(k3, (200,), 0, 5, dtype=jnp.int32)
    loss2 = jax.block_until_ready(triplet_semihard_loss(x2, t2, tm=128, tn=128))
    ref2 = _reference_loss(x2, t2)
    assert jnp.allclose(loss2, ref2, rtol=1e-4, atol=1e-4), (loss2, ref2)

    print("KERNEL_OK")
</pallas_src>

<mosaic_0001>
module attributes {stable_mosaic.version = 11 : i64} {
  func.func @_triplet_semihard_kernel(%arg0: i32, %arg1: i32, %arg2: memref<128x128xf32, #tpu.memory_space<vmem>>, %arg3: memref<128x128xf32, #tpu.memory_space<vmem>>, %arg4: memref<128x1xf32, #tpu.memory_space<vmem>>, %arg5: memref<1x128xf32, #tpu.memory_space<vmem>>, %arg6: memref<128x1xi32, #tpu.memory_space<vmem>>, %arg7: memref<1x128xi32, #tpu.memory_space<vmem>>, %arg8: memref<1x1xf32, #tpu.memory_space<smem>>, %arg9: memref<128x1xf32, #tpu.memory_space<vmem>>, %arg10: memref<128x1xf32, #tpu.memory_space<vmem>>) attributes {dimension_semantics = [#tpu.dimension_semantics<parallel>, #tpu.dimension_semantics<arbitrary>], iteration_bounds = array<i64: 1, 1>, scalar_prefetch = 0 : i64, scratch_operands = 2 : i64, tpu.core_type = #tpu.core_type<tc>, window_params = [{transform_indices = @transform_0, window_bounds = array<i64: 128, 128>}, {transform_indices = @transform_1, window_bounds = array<i64: 128, 128>}, {transform_indices = @transform_2, window_bounds = array<i64: 128, 1>}, {transform_indices = @transform_3, window_bounds = array<i64: 1, 128>}, {transform_indices = @transform_4, window_bounds = array<i64: 128, 1>}, {transform_indices = @transform_5, window_bounds = array<i64: 1, 128>}, {transform_indices = @transform_6, window_bounds = array<i64: 1, 1>}]} {
    %c0_i32 = arith.constant 0 : i32
    %0 = arith.cmpi eq, %arg1, %c0_i32 : i32
    %1 = arith.extui %0 : i1 to i32
    %c0_i32_0 = arith.constant 0 : i32
    %2 = arith.cmpi ne, %1, %c0_i32_0 : i32
    scf.if %2 {
      %cst_28 = arith.constant 0xFF800000 : f32
      %38 = vector.broadcast %cst_28 : f32 to vector<128x1xf32>
      %c0_29 = arith.constant 0 : index
      %c0_30 = arith.constant 0 : index
      %39 = vector.load %arg9[%c0_29, %c0_30] : memref<128x1xf32, #tpu.memory_space<vmem>>, vector<128x1xf32>
      tpu.vector_store %arg9[%c0_29, %c0_30], %38 {strides = array<i32>} : memref<128x1xf32, #tpu.memory_space<vmem>>, vector<128x1xf32>,
      %cst_31 = arith.constant 0x7F800000 : f32
      %40 = vector.broadcast %cst_31 : f32 to vector<128x1xf32>
      %c0_32 = arith.constant 0 : index
      %c0_33 = arith.constant 0 : index
      %41 = vector.load %arg10[%c0_32, %c0_33] : memref<128x1xf32, #tpu.memory_space<vmem>>, vector<128x1xf32>
      tpu.vector_store %arg10[%c0_32, %c0_33], %40 {strides = array<i32>} : memref<128x1xf32, #tpu.memory_space<vmem>>, vector<128x1xf32>,
    } else {
    }
    %c0 = arith.constant 0 : index
    %c0_1 = arith.constant 0 : index
    %3 = vector.load %arg2[%c0, %c0_1] : memref<128x128xf32, #tpu.memory_space<vmem>>, vector<128x128xf32>
    %c0_2 = arith.constant 0 : index
    %c0_3 = arith.constant 0 : index
    %4 = vector.load %arg3[%c0_2, %c0_3] : memref<128x128xf32, #tpu.memory_space<vmem>>, vector<128x128xf32>
    %cst = arith.constant dense<0.000000e+00> : vector<128x128xf32>
    %5 = tpu.matmul %3, %4, %cst {dimension_numbers = #tpu.dot_dimension_numbers<[1], [1], [0], [0], [0, 0, 1, 0], [], []>} : vector<128x128xf32>, vector<128x128xf32>, vector<128x128xf32> -> vector<128x128xf32>
    %c0_4 = arith.constant 0 : index
    %c0_5 = arith.constant 0 : index
    %6 = vector.load %arg4[%c0_4, %c0_5] : memref<128x1xf32, #tpu.memory_space<vmem>>, vector<128x1xf32>
    %c0_6 = arith.constant 0 : index
    %c0_7 = arith.constant 0 : index
    %7 = vector.load %arg5[%c0_6, %c0_7] : memref<1x128xf32, #tpu.memory_space<vmem>>, vector<1x128xf32>
    %8 = vector.broadcast %6 : vector<128x1xf32> to vector<128x128xf32>
    %9 = vector.broadcast %7 : vector<1x128xf32> to vector<128x128xf32>
    %10 = arith.addf %8, %9 : vector<128x128xf32>
    %cst_8 = arith.constant 2.000000e+00 : f32
    %11 = vector.broadcast %cst_8 : f32 to vector<128x128xf32>
    %12 = arith.mulf %11, %5 : vector<128x128xf32>
    %13 = arith.subf %10, %12 : vector<128x128xf32>
    %cst_9 = arith.constant 1.000000e-16 : f32
    %14 = vector.broadcast %cst_9 : f32 to vector<128x128xf32>
    %15 = arith.maximumf %13, %14 : vector<128x128xf32>
    %c0_10 = arith.constant 0 : index
    %c0_11 = arith.constant 0 : index
    %16 = vector.load %arg6[%c0_10, %c0_11] : memref<128x1xi32, #tpu.memory_space<vmem>>, vector<128x1xi32>
    %c0_12 = arith.constant 0 : index
    %c0_13 = arith.constant 0 : index
    %17 = vector.load %arg7[%c0_12, %c0_13] : memref<1x128xi32, #tpu.memory_space<vmem>>, vector<1x128xi32>
    %18 = vector.broadcast %16 : vector<128x1xi32> to vector<128x128xi32>
    %19 = vector.broadcast %17 : vector<1x128xi32> to vector<128x128xi32>
    %20 = arith.cmpi eq, %18, %19 : vector<128x128xi32>
    %cst_14 = arith.constant 0xFF800000 : f32
    %21 = vector.broadcast %cst_14 : f32 to vector<128x128xf32>
    %22 = arith.select %20, %15, %21 : vector<128x128xi1>, vector<128x128xf32>
    %cst_15 = arith.constant 0x7F800000 : f32
    %23 = vector.broadcast %cst_15 : f32 to vector<128x128xf32>
    %24 = arith.select %20, %23, %15 : vector<128x128xi1>, vector<128x128xf32>
    %c0_16 = arith.constant 0 : index
    %c0_17 = arith.constant 0 : index
    %25 = vector.load %arg9[%c0_16, %c0_17] : memref<128x1xf32, #tpu.memory_space<vmem>>, vector<128x1xf32>
    %cst_18 = arith.constant dense<0xFF800000> : vector<128xf32>
    %26 = vector.multi_reduction <maximumf>, %22, %cst_18 [1] : vector<128x128xf32> to vector<128xf32>
    %27 = vector.shape_cast %26 : vector<128xf32> to vector<128x1xf32>
    %28 = arith.maximumf %25, %27 : vector<128x1xf32>
    %c0_19 = arith.constant 0 : index
    %c0_20 = arith.constant 0 : index
    %29 = vector.load %arg9[%c0_19, %c0_20] : memref<128x1xf32, #tpu.memory_space<vmem>>, vector<128x1xf32>
    tpu.vector_store %arg9[%c0_19, %c0_20], %28 {strides = array<i32>} : memref<128x1xf32, #tpu.memory_space<vmem>>, vector<128x1xf32>,
    %c0_21 = arith.constant 0 : index
    %c0_22 = arith.constant 0 : index
    %30 = vector.load %arg10[%c0_21, %c0_22] : memref<128x1xf32, #tpu.memory_space<vmem>>, vector<128x1xf32>
    %cst_23 = arith.constant dense<0x7F800000> : vector<128xf32>
    %31 = vector.multi_reduction <minimumf>, %24, %cst_23 [1] : vector<128x128xf32> to vector<128xf32>
    %32 = vector.shape_cast %31 : vector<128xf32> to vector<128x1xf32>
    %33 = arith.minimumf %30, %32 : vector<128x1xf32>
    %c0_24 = arith.constant 0 : index
    %c0_25 = arith.constant 0 : index
    %34 = vector.load %arg10[%c0_24, %c0_25] : memref<128x1xf32, #tpu.memory_space<vmem>>, vector<128x1xf32>
    tpu.vector_store %arg10[%c0_24, %c0_25], %33 {strides = array<i32>} : memref<128x1xf32, #tpu.memory_space<vmem>>, vector<128x1xf32>,
    %c0_i32_26 = arith.constant 0 : i32
    %35 = arith.cmpi eq, %arg1, %c0_i32_26 : i32
    %36 = arith.extui %35 : i1 to i32
    %c0_i32_27 = arith.constant 0 : i32
    %37 = arith.cmpi ne, %36, %c0_i32_27 : i32
    scf.if %37 {
      %c0_28 = arith.constant 0 : index
      %c0_29 = arith.constant 0 : index
      %38 = vector.load %arg9[%c0_28, %c0_29] : memref<128x1xf32, #tpu.memory_space<vmem>>, vector<128x1xf32>
      %cst_30 = arith.constant 1.000000e-16 : f32
      %39 = vector.broadcast %cst_30 : f32 to vector<128x1xf32>
      %40 = arith.maximumf %38, %39 : vector<128x1xf32>
      %41 = math.sqrt %40 : vector<128x1xf32>
      %c0_31 = arith.constant 0 : index
      %c0_32 = arith.constant 0 : index
      %42 = vector.load %arg10[%c0_31, %c0_32] : memref<128x1xf32, #tpu.memory_space<vmem>>, vector<128x1xf32>
      %cst_33 = arith.constant 1.000000e-16 : f32
      %43 = vector.broadcast %cst_33 : f32 to vector<128x1xf32>
      %44 = arith.maximumf %42, %43 : vector<128x1xf32>
      %45 = math.sqrt %44 : vector<128x1xf32>
      %46 = arith.subf %41, %45 : vector<128x1xf32>
      %cst_34 = arith.constant 0.000000e+00 : f32
      %47 = vector.broadcast %cst_34 : f32 to vector<128x1xf32>
      %48 = arith.addf %46, %47 : vector<128x1xf32>
      %cst_35 = arith.constant 0.000000e+00 : f32
      %49 = vector.broadcast %cst_35 : f32 to vector<128x1xf32>
      %50 = arith.maximumf %48, %49 : vector<128x1xf32>
      %c128_i32 = arith.constant 128 : i32
      %51 = arith.muli %arg0, %c128_i32 : i32
      %52 = tpu.iota {dimensions = array<i32: 0>} : vector<128x1xi32>
      %53 = vector.broadcast %51 : i32 to vector<128x1xi32>
      %54 = arith.addi %53, %52 : vector<128x1xi32>
      %c8_i32 = arith.constant 8 : i32
      %55 = vector.broadcast %c8_i32 : i32 to vector<128x1xi32>
      %56 = arith.cmpi slt, %54, %55 : vector<128x1xi32>
      %cst_36 = arith.constant 0.000000e+00 : f32
      %57 = vector.broadcast %cst_36 : f32 to vector<128x1xf32>
      %58 = arith.select %56, %50, %57 : vector<128x1xi1>, vector<128x1xf32>
      %59 = vector.shape_cast %58 : vector<128x1xf32> to vector<1x128x1xf32>
      %cst_37 = arith.constant dense<0.000000e+00> : vector<1xf32>
      %60 = vector.multi_reduction <add>, %59, %cst_37 [1, 2] : vector<1x128x1xf32> to vector<1xf32>
      %61 = vector.shape_cast %60 : vector<1xf32> to vector<1x1x1xf32>
      %62 = vector.extract %61[0, 0, 0] : f32 from vector<1x1x1xf32>
      %c0_38 = arith.constant 0 : index
      %c0_39 = arith.constant 0 : index
      %63 = memref.load %arg8[%c0_38, %c0_39] : memref<1x1xf32, #tpu.memory_space<smem>>
      memref.store %62, %arg8[%c0_38, %c0_39] : memref<1x1xf32, #tpu.memory_space<smem>>
    } else {
    }
    return
  }
  func.func @transform_0(%arg0: i32, %arg1: i32) -> (i32, i32) {
    %c0_i32 = arith.constant 0 : i32
    %c0_i32_0 = arith.constant 0 : i32
    return %arg0, %c0_i32 : i32, i32
  }
  func.func @transform_1(%arg0: i32, %arg1: i32) -> (i32, i32) {
    %c0_i32 = arith.constant 0 : i32
    %c0_i32_0 = arith.constant 0 : i32
    return %arg1, %c0_i32 : i32, i32
  }
  func.func @transform_2(%arg0: i32, %arg1: i32) -> (i32, i32) {
    %c0_i32 = arith.constant 0 : i32
    %c0_i32_0 = arith.constant 0 : i32
    return %arg0, %c0_i32 : i32, i32
  }
  func.func @transform_3(%arg0: i32, %arg1: i32) -> (i32, i32) {
    %c0_i32 = arith.constant 0 : i32
    %c0_i32_0 = arith.constant 0 : i32
    return %c0_i32, %arg1 : i32, i32
  }
  func.func @transform_4(%arg0: i32, %arg1: i32) -> (i32, i32) {
    %c0_i32 = arith.constant 0 : i32
    %c0_i32_0 = arith.constant 0 : i32
    return %arg0, %c0_i32 : i32, i32
  }
  func.func @transform_5(%arg0: i32, %arg1: i32) -> (i32, i32) {
    %c0_i32 = arith.constant 0 : i32
    %c0_i32_0 = arith.constant 0 : i32
    return %c0_i32, %arg1 : i32, i32
  }
  func.func @transform_6(%arg0: i32, %arg1: i32) -> (i32, i32) {
    %c0_i32 = arith.constant 0 : i32
    %c0_i32_0 = arith.constant 0 : i32
    return %arg0, %c0_i32 : i32, i32
  }
}

</mosaic_0001>

<llo_original>
// kernel: tpu_custom_call.1
$region0: #{tpu_custom_call.1}
  #allocation0 [shape = 'u32[]', space=smem, size = 0x4, offset = 0x4, fixed_abs, tag = 'smem constant byte address 0x4 - core index']
  #allocation1 [shape = 'u32[72,128]{1,0:T(1,128)}', space=vmem, size = 0x9000, scoped, tag = 'internal scratch']
  #allocation2 [shape = 'f32[128,1]{1,0:T(8,128)}', space=vmem, size = 0x10000, scoped, tag = 'scratch operand']
  #allocation3 [shape = 'f32[128,1]{1,0:T(8,128)}', space=vmem, size = 0x10000, scoped, tag = 'scratch operand']
  %s0 = inlined_call_operand.vmem [shape: f32[128,128], index: 0, kind: input, shape index: {}]
  %s1 = inlined_call_operand.vmem [shape: f32[128,128], index: 1, kind: input, shape index: {}]
  %s2 = inlined_call_operand.vmem [shape: f32[128,1], index: 2, kind: input, shape index: {}]
  %s3 = inlined_call_operand.vmem [shape: f32[1,128], index: 3, kind: input, shape index: {}]
  %s4 = inlined_call_operand.vmem [shape: s32[128,1], index: 4, kind: input, shape index: {}]
  %s5 = inlined_call_operand.vmem [shape: s32[1,128], index: 5, kind: input, shape index: {}]
  %s6 = inlined_call_operand.hbm [shape: f32[1,1], index: 6, kind: output, shape index: {}]
  %s7 = sld [smem:[#allocation0]]
  $region42: #{tpu_custom_call.1} parent=0
    _
  %s9 = ssub.s32 1, %s7
  %s10 = scalar_select 0, %s9, %s7
  $region1: #{tpu_custom_call.1} parent=0
    #allocation4 [shape = 'u8[512]{0}', space=smem, size = 0x200, scoped, tag = 'output window, operand 0, single buffered']
    #allocation5 [shape = 's32[1]{0}', space=sflag, size = 0x4, scoped, tag = 'scoped memory for tpu_custom_call.1']
    %11 = vsyncpa [#allocation5], 0
    // Predicated region
    $region2: #{tpu_custom_call.1} parent=1 // pred_check
      _
    $region3: #{tpu_custom_call.1} parent=1 // pred_check_branch
      %13 = sbr.rel (0) target = $region5
    $region4: #{tpu_custom_call.1} parent=1 // pred_region
      _
    $region5: #{tpu_custom_call.1} parent=1 // pred_fallthru
      _
    // Predicated region
    $region6: #{tpu_custom_call.1} parent=1 // pred_check
      _
    $region7: #{tpu_custom_call.1} parent=1 // pred_check_branch
      %15 = sbr.rel (0) target = $region9
    $region8: #{tpu_custom_call.1} parent=1 // pred_region
      _
    $region9: #{tpu_custom_call.1} parent=1 // pred_fallthru
      _
    // Predicated region
    $region10: #{tpu_custom_call.1} parent=1 // pred_check
      _
    $region11: #{tpu_custom_call.1} parent=1 // pred_check_branch
      %17 = sbr.rel (0) target = $region13
    $region12: #{tpu_custom_call.1} parent=1 // pred_region
      _
    $region13: #{tpu_custom_call.1} parent=1 // pred_fallthru
      _
    // Predicated region
    $region14: #{tpu_custom_call.1} parent=1 // pred_check
      _
    $region15: #{tpu_custom_call.1} parent=1 // pred_check_branch
      %19 = sbr.rel (0) target = $region17
    $region16: #{tpu_custom_call.1} parent=1 // pred_region
      _
    $region17: #{tpu_custom_call.1} parent=1 // pred_fallthru
      _
    // Predicated region
    $region18: #{tpu_custom_call.1} parent=1 // pred_check
      _
    $region19: #{tpu_custom_call.1} parent=1 // pred_check_branch
      %21 = sbr.rel (0) target = $region21
    $region20: #{tpu_custom_call.1} parent=1 // pred_region
      _
    $region21: #{tpu_custom_call.1} parent=1 // pred_fallthru
      _
    // Predicated region
    $region22: #{tpu_custom_call.1} parent=1 // pred_check
      _
    $region23: #{tpu_custom_call.1} parent=1 // pred_check_branch
      %23 = sbr.rel (0) target = $region25
    $region24: #{tpu_custom_call.1} parent=1 // pred_region
      _
    $region25: #{tpu_custom_call.1} parent=1 // pred_fallthru
      _
    %p24 = scmp.eq.s32.totalorder 0, 0
    // Predicated region
    $region26: #{tpu_custom_call.1} parent=1 // pred_check
      %p25 = pneg %p24
    $region27: #{tpu_custom_call.1} parent=1 // pred_check_branch
      %27 = sbr.rel (%p25) target = $region29
    $region28: #{tpu_custom_call.1} parent=1 // pred_region
      %vm28 = vcmask 7168
      %29 = vst.msk [vmem:[#allocation2] sm:$0xff] %vm28, -inf
      %30 = vst.msk [vmem:[#allocation2 + $0x8] sm:$0xff] %vm28, -inf
      %31 = vst.msk [vmem:[#allocation2 + $0x10] sm:$0xff] %vm28, -inf
      %32 = vst.msk [vmem:[#allocation2 + $0x18] sm:$0xff] %vm28, -inf
      %33 = vst.msk [vmem:[#allocation2 + $0x20] sm:$0xff] %vm28, -inf
      %34 = vst.msk [vmem:[#allocation2 + $0x28] sm:$0xff] %vm28, -inf
      %35 = vst.msk [vmem:[#allocation2 + $0x30] sm:$0xff] %vm28, -inf
      %36 = vst.msk [vmem:[#allocation2 + $0x38] sm:$0xff] %vm28, -inf
      %37 = vst.msk [vmem:[#allocation2 + $0x40] sm:$0xff] %vm28, -inf
      %38 = vst.msk [vmem:[#allocation2 + $0x48] sm:$0xff] %vm28, -inf
      %39 = vst.msk [vmem:[#allocation2 + $0x50] sm:$0xff] %vm28, -inf
      %40 = vst.msk [vmem:[#allocation2 + $0x58] sm:$0xff] %vm28, -inf
      %41 = vst.msk [vmem:[#allocation2 + $0x60] sm:$0xff] %vm28, -inf
      %42 = vst.msk [vmem:[#allocation2 + $0x68] sm:$0xff] %vm28, -inf
      %43 = vst.msk [vmem:[#allocation2 + $0x70] sm:$0xff] %vm28, -inf
      %44 = vst.msk [vmem:[#allocation2 + $0x78] sm:$0xff] %vm28, -inf
      %45 = vst.msk [vmem:[#allocation3] sm:$0xff] %vm28, inf
      %46 = vst.msk [vmem:[#allocation3 + $0x8] sm:$0xff] %vm28, inf
      %47 = vst.msk [vmem:[#allocation3 + $0x10] sm:$0xff] %vm28, inf
      %48 = vst.msk [vmem:[#allocation3 + $0x18] sm:$0xff] %vm28, inf
      %49 = vst.msk [vmem:[#allocation3 + $0x20] sm:$0xff] %vm28, inf
      %50 = vst.msk [vmem:[#allocation3 + $0x28] sm:$0xff] %vm28, inf
      %51 = vst.msk [vmem:[#allocation3 + $0x30] sm:$0xff] %vm28, inf
      %52 = vst.msk [vmem:[#allocation3 + $0x38] sm:$0xff] %vm28, inf
      %53 = vst.msk [vmem:[#allocation3 + $0x40] sm:$0xff] %vm28, inf
      %54 = vst.msk [vmem:[#allocation3 + $0x48] sm:$0xff] %vm28, inf
      %55 = vst.msk [vmem:[#allocation3 + $0x50] sm:$0xff] %vm28, inf
      %56 = vst.msk [vmem:[#allocation3 + $0x58] sm:$0xff] %vm28, inf
      %57 = vst.msk [vmem:[#allocation3 + $0x60] sm:$0xff] %vm28, inf
      %58 = vst.msk [vmem:[#allocation3 + $0x68] sm:$0xff] %vm28, inf
      %59 = vst.msk [vmem:[#allocation3 + $0x70] sm:$0xff] %vm28, inf
      %60 = vst.msk [vmem:[#allocation3 + $0x78] sm:$0xff] %vm28, inf
    $region29: #{tpu_custom_call.1} parent=1 // pred_fallthru
      _
    %v61 = vld [vmem:[%s0] sm:$0xff]
    %v62 = vld [vmem:[%s0 + $0x8] sm:$0xff]
    %v63 = vld [vmem:[%s0 + $0x10] sm:$0xff]
    %v64 = vld [vmem:[%s0 + $0x18] sm:$0xff]
    %v65 = vld [vmem:[%s0 + $0x20] sm:$0xff]
    %v66 = vld [vmem:[%s0 + $0x28] sm:$0xff]
    %v67 = vld [vmem:[%s0 + $0x30] sm:$0xff]
    %v68 = vld [vmem:[%s0 + $0x38] sm:$0xff]
    %v69 = vld [vmem:[%s0 + $0x40] sm:$0xff]
    %v70 = vld [vmem:[%s0 + $0x48] sm:$0xff]
    %v71 = vld [vmem:[%s0 + $0x50] sm:$0xff]
    %v72 = vld [vmem:[%s0 + $0x58] sm:$0xff]
    %v73 = vld [vmem:[%s0 + $0x60] sm:$0xff]
    %v74 = vld [vmem:[%s0 + $0x68] sm:$0xff]
    %v75 = vld [vmem:[%s0 + $0x70] sm:$0xff]
    %v76 = vld [vmem:[%s0 + $0x78] sm:$0xff]
    %v77 = vld [vmem:[%s1] sm:$0xff]
    %v78 = vld [vmem:[%s1 + $0x8] sm:$0xff]
    %v79 = vld [vmem:[%s1 + $0x10] sm:$0xff]
    %v80 = vld [vmem:[%s1 + $0x18] sm:$0xff]
    %v81 = vld [vmem:[%s1 + $0x20] sm:$0xff]
    %v82 = vld [vmem:[%s1 + $0x28] sm:$0xff]
    %v83 = vld [vmem:[%s1 + $0x30] sm:$0xff]
    %v84 = vld [vmem:[%s1 + $0x38] sm:$0xff]
    %v85 = vld [vmem:[%s1 + $0x40] sm:$0xff]
    %v86 = vld [vmem:[%s1 + $0x48] sm:$0xff]
    %v87 = vld [vmem:[%s1 + $0x50] sm:$0xff]
    %v88 = vld [vmem:[%s1 + $0x58] sm:$0xff]
    %v89 = vld [vmem:[%s1 + $0x60] sm:$0xff]
    %v90 = vld [vmem:[%s1 + $0x68] sm:$0xff]
    %v91 = vld [vmem:[%s1 + $0x70] sm:$0xff]
    %v92 = vld [vmem:[%s1 + $0x78] sm:$0xff]
    %93 = vmatpush.xpose.msra.mxu0 %v92
    %94 = vmatpush.xpose.msra.mxu0 %v91
    %95 = vmatpush.xpose.msra.mxu0 %v90
    %96 = vmatpush.xpose.msra.mxu0 %v89
    %97 = vmatpush.xpose.msra.mxu0 %v88
    %98 = vmatpush.xpose.msra.mxu0 %v87
    %99 = vmatpush.xpose.msra.mxu0 %v86
    %100 = vmatpush.xpose.msra.mxu0 %v85
    %101 = vmatpush.xpose.msra.mxu0 %v84
    %102 = vmatpush.xpose.msra.mxu0 %v83
    %103 = vmatpush.xpose.msra.mxu0 %v82
    %104 = vmatpush.xpose.msra.mxu0 %v81
    %105 = vmatpush.xpose.msra.mxu0 %v80
    %106 = vmatpush.xpose.msra.mxu0 %v79
    %107 = vmatpush.xpose.msra.mxu0 %v78
    %108 = vmatpush.xpose.msra.mxu0 %v77
    %109 = vmatmul.f32.gmra.mxu0 %v61
    %v110 = vpop.f32.mrf.mxu0
    %v111 = vadd.f32 0.0, %v110
    %112 = vmatmul.f32.gmra.mxu0 %v62
    %v113 = vpop.f32.mrf.mxu0
    %v114 = vadd.f32 0.0, %v113
    %115 = vmatmul.f32.gmra.mxu0 %v63
    %v116 = vpop.f32.mrf.mxu0
    %v117 = vadd.f32 0.0, %v116
    %118 = vmatmul.f32.gmra.mxu0 %v64
    %v119 = vpop.f32.mrf.mxu0
    %v120 = vadd.f32 0.0, %v119
    %121 = vmatmul.f32.gmra.mxu0 %v65
    %v122 = vpop.f32.mrf.mxu0
    %v123 = vadd.f32 0.0, %v122
    %124 = vmatmul.f32.gmra.mxu0 %v66
    %v125 = vpop.f32.mrf.mxu0
    %v126 = vadd.f32 0.0, %v125
    %127 = vmatmul.f32.gmra.mxu0 %v67
    %v128 = vpop.f32.mrf.mxu0
    %v129 = vadd.f32 0.0, %v128
    %130 = vmatmul.f32.gmra.mxu0 %v68
    %v131 = vpop.f32.mrf.mxu0
    %v132 = vadd.f32 0.0, %v131
    %133 = vmatmul.f32.gmra.mxu0 %v69
    %v134 = vpop.f32.mrf.mxu0
    %v135 = vadd.f32 0.0, %v134
    %136 = vmatmul.f32.gmra.mxu0 %v70
    %v137 = vpop.f32.mrf.mxu0
    %v138 = vadd.f32 0.0, %v137
    %139 = vmatmul.f32.gmra.mxu0 %v71
    %v140 = vpop.f32.mrf.mxu0
    %v141 = vadd.f32 0.0, %v140
    %142 = vmatmul.f32.gmra.mxu0 %v72
    %v143 = vpop.f32.mrf.mxu0
    %v144 = vadd.f32 0.0, %v143
    %145 = vmatmul.f32.gmra.mxu0 %v73
    %v146 = vpop.f32.mrf.mxu0
    %v147 = vadd.f32 0.0, %v146
    %148 = vmatmul.f32.gmra.mxu0 %v74
    %v149 = vpop.f32.mrf.mxu0
    %v150 = vadd.f32 0.0, %v149
    %151 = vmatmul.f32.gmra.mxu0 %v75
    %v152 = vpop.f32.mrf.mxu0
    %v153 = vadd.f32 0.0, %v152
    %154 = vmatmul.f32.gmra.mxu0 %v76
    %v155 = vpop.f32.mrf.mxu0
    %v156 = vadd.f32 0.0, %v155
    %157 = vdwg.mxu0
    %v158 = vld [vmem:[%s2] sm:$0xff]
    %v159 = vld [vmem:[%s2 + $0x8] sm:$0xff]
    %v160 = vld [vmem:[%s2 + $0x10] sm:$0xff]
    %v161 = vld [vmem:[%s2 + $0x18] sm:$0xff]
    %v162 = vld [vmem:[%s2 + $0x20] sm:$0xff]
    %v163 = vld [vmem:[%s2 + $0x28] sm:$0xff]
    %v164 = vld [vmem:[%s2 + $0x30] sm:$0xff]
    %v165 = vld [vmem:[%s2 + $0x38] sm:$0xff]
    %v166 = vld [vmem:[%s2 + $0x40] sm:$0xff]
    %v167 = vld [vmem:[%s2 + $0x48] sm:$0xff]
    %v168 = vld [vmem:[%s2 + $0x50] sm:$0xff]
    %v169 = vld [vmem:[%s2 + $0x58] sm:$0xff]
    %v170 = vld [vmem:[%s2 + $0x60] sm:$0xff]
    %v171 = vld [vmem:[%s2 + $0x68] sm:$0xff]
    %v172 = vld [vmem:[%s2 + $0x70] sm:$0xff]
    %v173 = vld [vmem:[%s2 + $0x78] sm:$0xff]
    %v174 = vld [vmem:[%s3] sm:$0x1]
    %176 = vset.pattern.permute.xlu0 0
    %177 = vperm.xlu0 %176, %v158
    %v178 = vpop.permute.xlu0 %177
    %181 = vset.pattern.permute.xlu0 0
    %182 = vperm.xlu0 %181, %v159
    %v183 = vpop.permute.xlu0 %182
    %186 = vset.pattern.permute.xlu0 0
    %187 = vperm.xlu0 %186, %v160
    %v188 = vpop.permute.xlu0 %187
    %191 = vset.pattern.permute.xlu0 0
    %192 = vperm.xlu0 %191, %v161
    %v193 = vpop.permute.xlu0 %192
    %196 = vset.pattern.permute.xlu0 0
    %197 = vperm.xlu0 %196, %v162
    %v198 = vpop.permute.xlu0 %197
    %201 = vset.pattern.permute.xlu0 0
    %202 = vperm.xlu0 %201, %v163
    %v203 = vpop.permute.xlu0 %202
    %206 = vset.pattern.permute.xlu0 0
    %207 = vperm.xlu0 %206, %v164
    %v208 = vpop.permute.xlu0 %207
    %211 = vset.pattern.permute.xlu0 0
    %212 = vperm.xlu0 %211, %v165
    %v213 = vpop.permute.xlu0 %212
    %216 = vset.pattern.permute.xlu0 0
    %217 = vperm.xlu0 %216, %v166
    %v218 = vpop.permute.xlu0 %217
    %221 = vset.pattern.permute.xlu0 0
    %222 = vperm.xlu0 %221, %v167
    %v223 = vpop.permute.xlu0 %222
    %226 = vset.pattern.permute.xlu0 0
    %227 = vperm.xlu0 %226, %v168
    %v228 = vpop.permute.xlu0 %227
    %231 = vset.pattern.permute.xlu0 0
    %232 = vperm.xlu0 %231, %v169
    %v233 = vpop.permute.xlu0 %232
    %236 = vset.pattern.permute.xlu0 0
    %237 = vperm.xlu0 %236, %v170
    %v238 = vpop.permute.xlu0 %237
    %241 = vset.pattern.permute.xlu0 0
    %242 = vperm.xlu0 %241, %v171
    %v243 = vpop.permute.xlu0 %242
    %246 = vset.pattern.permute.xlu0 0
    %247 = vperm.xlu0 %246, %v172
    %v248 = vpop.permute.xlu0 %247
    %251 = vset.pattern.permute.xlu0 0
    %252 = vperm.xlu0 %251, %v173
    %v253 = vpop.permute.xlu0 %252
    %v256 = vperm.slane %v174, 0
    %v258 = vadd.f32 %v178, %v256
    %v259 = vadd.f32 %v183, %v256
    %v260 = vadd.f32 %v188, %v256
    %v261 = vadd.f32 %v193, %v256
    %v262 = vadd.f32 %v198, %v256
    %v263 = vadd.f32 %v203, %v256
    %v264 = vadd.f32 %v208, %v256
    %v265 = vadd.f32 %v213, %v256
    %v266 = vadd.f32 %v218, %v256
    %v267 = vadd.f32 %v223, %v256
    %v268 = vadd.f32 %v228, %v256
    %v269 = vadd.f32 %v233, %v256
    %v270 = vadd.f32 %v238, %v256
    %v271 = vadd.f32 %v243, %v256
    %v272 = vadd.f32 %v248, %v256
    %v273 = vadd.f32 %v253, %v256
    %v274 = vmul.f32 %v111, 2.0
    %v275 = vmul.f32 %v114, 2.0
    %v276 = vmul.f32 %v117, 2.0
    %v277 = vmul.f32 %v120, 2.0
    %v278 = vmul.f32 %v123, 2.0
    %v279 = vmul.f32 %v126, 2.0
    %v280 = vmul.f32 %v129, 2.0
    %v281 = vmul.f32 %v132, 2.0
    %v282 = vmul.f32 %v135, 2.0
    %v283 = vmul.f32 %v138, 2.0
    %v284 = vmul.f32 %v141, 2.0
    %v285 = vmul.f32 %v144, 2.0
    %v286 = vmul.f32 %v147, 2.0
    %v287 = vmul.f32 %v150, 2.0
    %v288 = vmul.f32 %v153, 2.0
    %v289 = vmul.f32 %v156, 2.0
    %v290 = vsub.f32 %v258, %v274
    %v291 = vsub.f32 %v259, %v275
    %v292 = vsub.f32 %v260, %v276
    %v293 = vsub.f32 %v261, %v277
    %v294 = vsub.f32 %v262, %v278
    %v295 = vsub.f32 %v263, %v279
    %v296 = vsub.f32 %v264, %v280
    %v297 = vsub.f32 %v265, %v281
    %v298 = vsub.f32 %v266, %v282
    %v299 = vsub.f32 %v267, %v283
    %v300 = vsub.f32 %v268, %v284
    %v301 = vsub.f32 %v269, %v285
    %v302 = vsub.f32 %v270, %v286
    %v303 = vsub.f32 %v271, %v287
    %v304 = vsub.f32 %v272, %v288
    %v305 = vsub.f32 %v273, %v289
    %v306 = vmax.f32 %v290, 1e-16
    %v307 = vmax.f32 %v291, 1e-16
    %v308 = vmax.f32 %v292, 1e-16
    %v309 = vmax.f32 %v293, 1e-16
    %v310 = vmax.f32 %v294, 1e-16
    %v311 = vmax.f32 %v295, 1e-16
    %v312 = vmax.f32 %v296, 1e-16
    %v313 = vmax.f32 %v297, 1e-16
    %v314 = vmax.f32 %v298, 1e-16
    %v315 = vmax.f32 %v299, 1e-16
    %v316 = vmax.f32 %v300, 1e-16
    %v317 = vmax.f32 %v301, 1e-16
    %v318 = vmax.f32 %v302, 1e-16
    %v319 = vmax.f32 %v303, 1e-16
    %v320 = vmax.f32 %v304, 1e-16
    %v321 = vmax.f32 %v305, 1e-16
    %v322 = vld [vmem:[%s4] sm:$0xff]
    %v323 = vld [vmem:[%s4 + $0x8] sm:$0xff]
    %v324 = vld [vmem:[%s4 + $0x10] sm:$0xff]
    %v325 = vld [vmem:[%s4 + $0x18] sm:$0xff]
    %v326 = vld [vmem:[%s4 + $0x20] sm:$0xff]
    %v327 = vld [vmem:[%s4 + $0x28] sm:$0xff]
    %v328 = vld [vmem:[%s4 + $0x30] sm:$0xff]
    %v329 = vld [vmem:[%s4 + $0x38] sm:$0xff]
    %v330 = vld [vmem:[%s4 + $0x40] sm:$0xff]
    %v331 = vld [vmem:[%s4 + $0x48] sm:$0xff]
    %v332 = vld [vmem:[%s4 + $0x50] sm:$0xff]
    %v333 = vld [vmem:[%s4 + $0x58] sm:$0xff]
    %v334 = vld [vmem:[%s4 + $0x60] sm:$0xff]
    %v335 = vld [vmem:[%s4 + $0x68] sm:$0xff]
    %v336 = vld [vmem:[%s4 + $0x70] sm:$0xff]
    %v337 = vld [vmem:[%s4 + $0x78] sm:$0xff]
    %v338 = vld [vmem:[%s5] sm:$0x1]
    %339 = vset.pattern.permute.xlu0 0
    %340 = vperm.xlu0 %339, %v322
    %v341 = vpop.permute.xlu0 %340
    %342 = vset.pattern.permute.xlu0 0
    %343 = vperm.xlu0 %342, %v323
    %v344 = vpop.permute.xlu0 %343
    %345 = vset.pattern.permute.xlu0 0
    %346 = vperm.xlu0 %345, %v324
    %v347 = vpop.permute.xlu0 %346
    %348 = vset.pattern.permute.xlu0 0
    %349 = vperm.xlu0 %348, %v325
    %v350 = vpop.permute.xlu0 %349
    %351 = vset.pattern.permute.xlu0 0
    %352 = vperm.xlu0 %351, %v326
    %v353 = vpop.permute.xlu0 %352
    %354 = vset.pattern.permute.xlu0 0
    %355 = vperm.xlu0 %354, %v327
    %v356 = vpop.permute.xlu0 %355
    %357 = vset.pattern.permute.xlu0 0
    %358 = vperm.xlu0 %357, %v328
    %v359 = vpop.permute.xlu0 %358
    %360 = vset.pattern.permute.xlu0 0
    %361 = vperm.xlu0 %360, %v329
    %v362 = vpop.permute.xlu0 %361
    %363 = vset.pattern.permute.xlu0 0
    %364 = vperm.xlu0 %363, %v330
    %v365 = vpop.permute.xlu0 %364
    %366 = vset.pattern.permute.xlu0 0
    %367 = vperm.xlu0 %366, %v331
    %v368 = vpop.permute.xlu0 %367
    %369 = vset.pattern.permute.xlu0 0
    %370 = vperm.xlu0 %369, %v332
    %v371 = vpop.permute.xlu0 %370
    %372 = vset.pattern.permute.xlu0 0
    %373 = vperm.xlu0 %372, %v333
    %v374 = vpop.permute.xlu0 %373
    %375 = vset.pattern.permute.xlu0 0
    %376 = vperm.xlu0 %375, %v334
    %v377 = vpop.permute.xlu0 %376
    %378 = vset.pattern.permute.xlu0 0
    %379 = vperm.xlu0 %378, %v335
    %v380 = vpop.permute.xlu0 %379
    %381 = vset.pattern.permute.xlu0 0
    %382 = vperm.xlu0 %381, %v336
    %v383 = vpop.permute.xlu0 %382
    %384 = vset.pattern.permute.xlu0 0
    %385 = vperm.xlu0 %384, %v337
    %v386 = vpop.permute.xlu0 %385
    %v387 = vperm.slane %v338, 0
    %vm388 = vcmp.eq.s32.totalorder %v341, %v387
    %vm389 = vcmp.eq.s32.totalorder %v344, %v387
    %vm390 = vcmp.eq.s32.totalorder %v347, %v387
    %vm391 = vcmp.eq.s32.totalorder %v350, %v387
    %vm392 = vcmp.eq.s32.totalorder %v353, %v387
    %vm393 = vcmp.eq.s32.totalorder %v356, %v387
    %vm394 = vcmp.eq.s32.totalorder %v359, %v387
    %vm395 = vcmp.eq.s32.totalorder %v362, %v387
    %vm396 = vcmp.eq.s32.totalorder %v365, %v387
    %vm397 = vcmp.eq.s32.totalorder %v368, %v387
    %vm398 = vcmp.eq.s32.totalorder %v371, %v387
    %vm399 = vcmp.eq.s32.totalorder %v374, %v387
    %vm400 = vcmp.eq.s32.totalorder %v377, %v387
    %vm401 = vcmp.eq.s32.totalorder %v380, %v387
    %vm402 = vcmp.eq.s32.totalorder %v383, %v387
    %vm403 = vcmp.eq.s32.totalorder %v386, %v387
    %v404 = vsel %vm388, %v306, -inf
    %v405 = vsel %vm389, %v307, -inf
    %v406 = vsel %vm390, %v308, -inf
    %v407 = vsel %vm391, %v309, -inf
    %v408 = vsel %vm392, %v310, -inf
    %v409 = vsel %vm393, %v311, -inf
    %v410 = vsel %vm394, %v312, -inf
    %v411 = vsel %vm395, %v313, -inf
    %v412 = vsel %vm396, %v314, -inf
    %v413 = vsel %vm397, %v315, -inf
    %v414 = vsel %vm398, %v316, -inf
    %v415 = vsel %vm399, %v317, -inf
    %v416 = vsel %vm400, %v318, -inf
    %v417 = vsel %vm401, %v319, -inf
    %v418 = vsel %vm402, %v320, -inf
    %v419 = vsel %vm403, %v321, -inf
    %v420 = vsel %vm388, inf, %v306
    %v421 = vsel %vm389, inf, %v307
    %v422 = vsel %vm390, inf, %v308
    %v423 = vsel %vm391, inf, %v309
    %v424 = vsel %vm392, inf, %v310
    %v425 = vsel %vm393, inf, %v311
    %v426 = vsel %vm394, inf, %v312
    %v427 = vsel %vm395, inf, %v313
    %v428 = vsel %vm396, inf, %v314
    %v429 = vsel %vm397, inf, %v315
    %v430 = vsel %vm398, inf, %v316
    %v431 = vsel %vm399, inf, %v317
    %v432 = vsel %vm400, inf, %v318
    %v433 = vsel %vm401, inf, %v319
    %v434 = vsel %vm402, inf, %v320
    %v435 = vsel %vm403, inf, %v321
    %v436 = vld [vmem:[#allocation2] sm:$0xff]
    %v437 = vld [vmem:[#allocation2 + $0x8] sm:$0xff]
    %v438 = vld [vmem:[#allocation2 + $0x10] sm:$0xff]
    %v439 = vld [vmem:[#allocation2 + $0x18] sm:$0xff]
    %v440 = vld [vmem:[#allocation2 + $0x20] sm:$0xff]
    %v441 = vld [vmem:[#allocation2 + $0x28] sm:$0xff]
    %v442 = vld [vmem:[#allocation2 + $0x30] sm:$0xff]
    %v443 = vld [vmem:[#allocation2 + $0x38] sm:$0xff]
    %v444 = vld [vmem:[#allocation2 + $0x40] sm:$0xff]
    %v445 = vld [vmem:[#allocation2 + $0x48] sm:$0xff]
    %v446 = vld [vmem:[#allocation2 + $0x50] sm:$0xff]
    %v447 = vld [vmem:[#allocation2 + $0x58] sm:$0xff]
    %v448 = vld [vmem:[#allocation2 + $0x60] sm:$0xff]
    %v449 = vld [vmem:[#allocation2 + $0x68] sm:$0xff]
    %v450 = vld [vmem:[#allocation2 + $0x70] sm:$0xff]
    %v451 = vld [vmem:[#allocation2 + $0x78] sm:$0xff]
    %452 = vmax.xlane.f32.xlu0 %v404
    %v453 = vpop.xlane.xlu0 %452
    %454 = vmax.xlane.f32.xlu0 %v405
    %v455 = vpop.xlane.xlu0 %454
    %456 = vmax.xlane.f32.xlu0 %v406
    %v457 = vpop.xlane.xlu0 %456
    %458 = vmax.xlane.f32.xlu0 %v407
    %v459 = vpop.xlane.xlu0 %458
    %460 = vmax.xlane.f32.xlu0 %v408
    %v461 = vpop.xlane.xlu0 %460
    %462 = vmax.xlane.f32.xlu0 %v409
    %v463 = vpop.xlane.xlu0 %462
    %464 = vmax.xlane.f32.xlu0 %v410
    %v465 = vpop.xlane.xlu0 %464
    %466 = vmax.xlane.f32.xlu0 %v411
    %v467 = vpop.xlane.xlu0 %466
    %468 = vmax.xlane.f32.xlu0 %v412
    %v469 = vpop.xlane.xlu0 %468
    %470 = vmax.xlane.f32.xlu0 %v413
    %v471 = vpop.xlane.xlu0 %470
    %472 = vmax.xlane.f32.xlu0 %v414
    %v473 = vpop.xlane.xlu0 %472
    %474 = vmax.xlane.f32.xlu0 %v415
    %v475 = vpop.xlane.xlu0 %474
    %476 = vmax.xlane.f32.xlu0 %v416
    %v477 = vpop.xlane.xlu0 %476
    %478 = vmax.xlane.f32.xlu0 %v417
    %v479 = vpop.xlane.xlu0 %478
    %480 = vmax.xlane.f32.xlu0 %v418
    %v481 = vpop.xlane.xlu0 %480
    %482 = vmax.xlane.f32.xlu0 %v419
    %v483 = vpop.xlane.xlu0 %482
    %v484 = vmax.f32 %v436, %v453
    %v485 = vmax.f32 %v437, %v455
    %v486 = vmax.f32 %v438, %v457
    %v487 = vmax.f32 %v439, %v459
    %v488 = vmax.f32 %v440, %v461
    %v489 = vmax.f32 %v441, %v463
    %v490 = vmax.f32 %v442, %v465
    %v491 = vmax.f32 %v443, %v467
    %v492 = vmax.f32 %v444, %v469
    %v493 = vmax.f32 %v445, %v471
    %v494 = vmax.f32 %v446, %v473
    %v495 = vmax.f32 %v447, %v475
    %v496 = vmax.f32 %v448, %v477
    %v497 = vmax.f32 %v449, %v479
    %v498 = vmax.f32 %v450, %v481
    %v499 = vmax.f32 %v451, %v483
    %vm500 = vcmask 7168
    %501 = vst.msk [vmem:[#allocation2] sm:$0xff] %vm500, %v484
    %502 = vst.msk [vmem:[#allocation2 + $0x8] sm:$0xff] %vm500, %v485
    %503 = vst.msk [vmem:[#allocation2 + $0x10] sm:$0xff] %vm500, %v486
    %504 = vst.msk [vmem:[#allocation2 + $0x18] sm:$0xff] %vm500, %v487
    %505 = vst.msk [vmem:[#allocation2 + $0x20] sm:$0xff] %vm500, %v488
    %506 = vst.msk [vmem:[#allocation2 + $0x28] sm:$0xff] %vm500, %v489
    %507 = vst.msk [vmem:[#allocation2 + $0x30] sm:$0xff] %vm500, %v490
    %508 = vst.msk [vmem:[#allocation2 + $0x38] sm:$0xff] %vm500, %v491
    %509 = vst.msk [vmem:[#allocation2 + $0x40] sm:$0xff] %vm500, %v492
    %510 = vst.msk [vmem:[#allocation2 + $0x48] sm:$0xff] %vm500, %v493
    %511 = vst.msk [vmem:[#allocation2 + $0x50] sm:$0xff] %vm500, %v494
    %512 = vst.msk [vmem:[#allocation2 + $0x58] sm:$0xff] %vm500, %v495
    %513 = vst.msk [vmem:[#allocation2 + $0x60] sm:$0xff] %vm500, %v496
    %514 = vst.msk [vmem:[#allocation2 + $0x68] sm:$0xff] %vm500, %v497
    %515 = vst.msk [vmem:[#allocation2 + $0x70] sm:$0xff] %vm500, %v498
    %516 = vst.msk [vmem:[#allocation2 + $0x78] sm:$0xff] %vm500, %v499
    %v517 = vld [vmem:[#allocation3] sm:$0xff]
    %v518 = vld [vmem:[#allocation3 + $0x8] sm:$0xff]
    %v519 = vld [vmem:[#allocation3 + $0x10] sm:$0xff]
    %v520 = vld [vmem:[#allocation3 + $0x18] sm:$0xff]
    %v521 = vld [vmem:[#allocation3 + $0x20] sm:$0xff]
    %v522 = vld [vmem:[#allocation3 + $0x28] sm:$0xff]
    %v523 = vld [vmem:[#allocation3 + $0x30] sm:$0xff]
    %v524 = vld [vmem:[#allocation3 + $0x38] sm:$0xff]
    %v525 = vld [vmem:[#allocation3 + $0x40] sm:$0xff]
    %v526 = vld [vmem:[#allocation3 + $0x48] sm:$0xff]
    %v527 = vld [vmem:[#allocation3 + $0x50] sm:$0xff]
    %v528 = vld [vmem:[#allocation3 + $0x58] sm:$0xff]
    %v529 = vld [vmem:[#allocation3 + $0x60] sm:$0xff]
    %v530 = vld [vmem:[#allocation3 + $0x68] sm:$0xff]
    %v531 = vld [vmem:[#allocation3 + $0x70] sm:$0xff]
    %v532 = vld [vmem:[#allocation3 + $0x78] sm:$0xff]
    %533 = vmin.xlane.f32.xlu0 %v420
    %v534 = vpop.xlane.xlu0 %533
    %535 = vmin.xlane.f32.xlu0 %v421
    %v536 = vpop.xlane.xlu0 %535
    %537 = vmin.xlane.f32.xlu0 %v422
    %v538 = vpop.xlane.xlu0 %537
    %539 = vmin.xlane.f32.xlu0 %v423
    %v540 = vpop.xlane.xlu0 %539
    %541 = vmin.xlane.f32.xlu0 %v424
    %v542 = vpop.xlane.xlu0 %541
    %543 = vmin.xlane.f32.xlu0 %v425
    %v544 = vpop.xlane.xlu0 %543
    %545 = vmin.xlane.f32.xlu0 %v426
    %v546 = vpop.xlane.xlu0 %545
    %547 = vmin.xlane.f32.xlu0 %v427
    %v548 = vpop.xlane.xlu0 %547
    %549 = vmin.xlane.f32.xlu0 %v428
    %v550 = vpop.xlane.xlu0 %549
    %551 = vmin.xlane.f32.xlu0 %v429
    %v552 = vpop.xlane.xlu0 %551
    %553 = vmin.xlane.f32.xlu0 %v430
    %v554 = vpop.xlane.xlu0 %553
    %555 = vmin.xlane.f32.xlu0 %v431
    %v556 = vpop.xlane.xlu0 %555
    %557 = vmin.xlane.f32.xlu0 %v432
    %v558 = vpop.xlane.xlu0 %557
    %559 = vmin.xlane.f32.xlu0 %v433
    %v560 = vpop.xlane.xlu0 %559
    %561 = vmin.xlane.f32.xlu0 %v434
    %v562 = vpop.xlane.xlu0 %561
    %563 = vmin.xlane.f32.xlu0 %v435
    %v564 = vpop.xlane.xlu0 %563
    %v565 = vmin.f32 %v517, %v534
    %v566 = vmin.f32 %v518, %v536
    %v567 = vmin.f32 %v519, %v538
    %v568 = vmin.f32 %v520, %v540
    %v569 = vmin.f32 %v521, %v542
    %v570 = vmin.f32 %v522, %v544
    %v571 = vmin.f32 %v523, %v546
    %v572 = vmin.f32 %v524, %v548
    %v573 = vmin.f32 %v525, %v550
    %v574 = vmin.f32 %v526, %v552
    %v575 = vmin.f32 %v527, %v554
    %v576 = vmin.f32 %v528, %v556
    %v577 = vmin.f32 %v529, %v558
    %v578 = vmin.f32 %v530, %v560
    %v579 = vmin.f32 %v531, %v562
    %v580 = vmin.f32 %v532, %v564
    %581 = vst.msk [vmem:[#allocation3] sm:$0xff] %vm500, %v565
    %582 = vst.msk [vmem:[#allocation3 + $0x8] sm:$0xff] %vm500, %v566
    %583 = vst.msk [vmem:[#allocation3 + $0x10] sm:$0xff] %vm500, %v567
    %584 = vst.msk [vmem:[#allocation3 + $0x18] sm:$0xff] %vm500, %v568
    %585 = vst.msk [vmem:[#allocation3 + $0x20] sm:$0xff] %vm500, %v569
    %586 = vst.msk [vmem:[#allocation3 + $0x28] sm:$0xff] %vm500, %v570
    %587 = vst.msk [vmem:[#allocation3 + $0x30] sm:$0xff] %vm500, %v571
    %588 = vst.msk [vmem:[#allocation3 + $0x38] sm:$0xff] %vm500, %v572
    %589 = vst.msk [vmem:[#allocation3 + $0x40] sm:$0xff] %vm500, %v573
    %590 = vst.msk [vmem:[#allocation3 + $0x48] sm:$0xff] %vm500, %v574
    %591 = vst.msk [vmem:[#allocation3 + $0x50] sm:$0xff] %vm500, %v575
    %592 = vst.msk [vmem:[#allocation3 + $0x58] sm:$0xff] %vm500, %v576
    %593 = vst.msk [vmem:[#allocation3 + $0x60] sm:$0xff] %vm500, %v577
    %594 = vst.msk [vmem:[#allocation3 + $0x68] sm:$0xff] %vm500, %v578
    %595 = vst.msk [vmem:[#allocation3 + $0x70] sm:$0xff] %vm500, %v579
    %596 = vst.msk [vmem:[#allocation3 + $0x78] sm:$0xff] %vm500, %v580
    // Predicated region
    $region30: #{tpu_custom_call.1} parent=1 // pred_check
      %p597 = pneg %p24
    $region31: #{tpu_custom_call.1} parent=1 // pred_check_branch
      %599 = sbr.rel (%p597) target = $region33
    $region32: #{tpu_custom_call.1} parent=1 // pred_region
      %v600 = vld [vmem:[#allocation2] sm:$0xff]
      %v601 = vld [vmem:[#allocation2 + $0x8] sm:$0xff]
      %v602 = vld [vmem:[#allocation2 + $0x10] sm:$0xff]
      %v603 = vld [vmem:[#allocation2 + $0x18] sm:$0xff]
      %v604 = vld [vmem:[#allocation2 + $0x20] sm:$0xff]
      %v605 = vld [vmem:[#allocation2 + $0x28] sm:$0xff]
      %v606 = vld [vmem:[#allocation2 + $0x30] sm:$0xff]
      %v607 = vld [vmem:[#allocation2 + $0x38] sm:$0xff]
      %v608 = vld [vmem:[#allocation2 + $0x40] sm:$0xff]
      %v609 = vld [vmem:[#allocation2 + $0x48] sm:$0xff]
      %v610 = vld [vmem:[#allocation2 + $0x50] sm:$0xff]
      %v611 = vld [vmem:[#allocation2 + $0x58] sm:$0xff]
      %v612 = vld [vmem:[#allocation2 + $0x60] sm:$0xff]
      %v613 = vld [vmem:[#allocation2 + $0x68] sm:$0xff]
      %v614 = vld [vmem:[#allocation2 + $0x70] sm:$0xff]
      %v615 = vld [vmem:[#allocation2 + $0x78] sm:$0xff]
      %v616 = vmax.f32 %v600, 1e-16
      %v617 = vmax.f32 %v601, 1e-16
      %v618 = vmax.f32 %v602, 1e-16
      %v619 = vmax.f32 %v603, 1e-16
      %v620 = vmax.f32 %v604, 1e-16
      %v621 = vmax.f32 %v605, 1e-16
      %v622 = vmax.f32 %v606, 1e-16
      %v623 = vmax.f32 %v607, 1e-16
      %v624 = vmax.f32 %v608, 1e-16
      %v625 = vmax.f32 %v609, 1e-16
      %v626 = vmax.f32 %v610, 1e-16
      %v627 = vmax.f32 %v611, 1e-16
      %v628 = vmax.f32 %v612, 1e-16
      %v629 = vmax.f32 %v613, 1e-16
      %v630 = vmax.f32 %v614, 1e-16
      %v631 = vmax.f32 %v615, 1e-16
      %v632 = vrsqrt.pop %v616
      %v633 = vmul.f32 %v632, %v616
      %v634 = vmul.f32 %v633, %v632
      %v635 = vmul.f32 0.5, %v634
      %v636 = vsub.f32 1.5, %v635
      %v637 = vmul.f32 %v632, %v636
      %v638 = vmul.f32 %v616, %v637
      %vm639 = vcmp.eq.f32.partialorder %v616, inf
      %v640 = vsel %vm639, %v616, %v638
      %vm641 = vcmp.eq.f32.partialorder %v616, 0.0
      %v642 = vand.u32 %v616, 2147483648
      %v643 = vsel %vm641, %v642, %v640
      %v644 = vrsqrt.pop %v617
      %v645 = vmul.f32 %v644, %v617
      %v646 = vmul.f32 %v645, %v644
      %v647 = vmul.f32 0.5, %v646
      %v648 = vsub.f32 1.5, %v647
      %v649 = vmul.f32 %v644, %v648
      %v650 = vmul.f32 %v617, %v649
      %vm651 = vcmp.eq.f32.partialorder %v617, inf
      %v652 = vsel %vm651, %v617, %v650
      %vm653 = vcmp.eq.f32.partialorder %v617, 0.0
      %v654 = vand.u32 %v617, 2147483648
      %v655 = vsel %vm653, %v654, %v652
      %v656 = vrsqrt.pop %v618
      %v657 = vmul.f32 %v656, %v618
      %v658 = vmul.f32 %v657, %v656
      %v659 = vmul.f32 0.5, %v658
      %v660 = vsub.f32 1.5, %v659
      %v661 = vmul.f32 %v656, %v660
      %v662 = vmul.f32 %v618, %v661
      %vm663 = vcmp.eq.f32.partialorder %v618, inf
      %v664 = vsel %vm663, %v618, %v662
      %vm665 = vcmp.eq.f32.partialorder %v618, 0.0
      %v666 = vand.u32 %v618, 2147483648
      %v667 = vsel %vm665, %v666, %v664
      %v668 = vrsqrt.pop %v619
      %v669 = vmul.f32 %v668, %v619
      %v670 = vmul.f32 %v669, %v668
      %v671 = vmul.f32 0.5, %v670
      %v672 = vsub.f32 1.5, %v671
      %v673 = vmul.f32 %v668, %v672
      %v674 = vmul.f32 %v619, %v673
      %vm675 = vcmp.eq.f32.partialorder %v619, inf
      %v676 = vsel %vm675, %v619, %v674
      %vm677 = vcmp.eq.f32.partialorder %v619, 0.0
      %v678 = vand.u32 %v619, 2147483648
      %v679 = vsel %vm677, %v678, %v676
      %v680 = vrsqrt.pop %v620
      %v681 = vmul.f32 %v680, %v620
      %v682 = vmul.f32 %v681, %v680
      %v683 = vmul.f32 0.5, %v682
      %v684 = vsub.f32 1.5, %v683
      %v685 = vmul.f32 %v680, %v684
      %v686 = vmul.f32 %v620, %v685
      %vm687 = vcmp.eq.f32.partialorder %v620, inf
      %v688 = vsel %vm687, %v620, %v686
      %vm689 = vcmp.eq.f32.partialorder %v620, 0.0
      %v690 = vand.u32 %v620, 2147483648
      %v691 = vsel %vm689, %v690, %v688
      %v692 = vrsqrt.pop %v621
      %v693 = vmul.f32 %v692, %v621
      %v694 = vmul.f32 %v693, %v692
      %v695 = vmul.f32 0.5, %v694
      %v696 = vsub.f32 1.5, %v695
      %v697 = vmul.f32 %v692, %v696
      %v698 = vmul.f32 %v621, %v697
      %vm699 = vcmp.eq.f32.partialorder %v621, inf
      %v700 = vsel %vm699, %v621, %v698
      %vm701 = vcmp.eq.f32.partialorder %v621, 0.0
      %v702 = vand.u32 %v621, 2147483648
      %v703 = vsel %vm701, %v702, %v700
      %v704 = vrsqrt.pop %v622
      %v705 = vmul.f32 %v704, %v622
      %v706 = vmul.f32 %v705, %v704
      %v707 = vmul.f32 0.5, %v706
      %v708 = vsub.f32 1.5, %v707
      %v709 = vmul.f32 %v704, %v708
      %v710 = vmul.f32 %v622, %v709
      %vm711 = vcmp.eq.f32.partialorder %v622, inf
      %v712 = vsel %vm711, %v622, %v710
      %vm713 = vcmp.eq.f32.partialorder %v622, 0.0
      %v714 = vand.u32 %v622, 2147483648
      %v715 = vsel %vm713, %v714, %v712
      %v716 = vrsqrt.pop %v623
      %v717 = vmul.f32 %v716, %v623
      %v718 = vmul.f32 %v717, %v716
      %v719 = vmul.f32 0.5, %v718
      %v720 = vsub.f32 1.5, %v719
      %v721 = vmul.f32 %v716, %v720
      %v722 = vmul.f32 %v623, %v721
      %vm723 = vcmp.eq.f32.partialorder %v623, inf
      %v724 = vsel %vm723, %v623, %v722
      %vm725 = vcmp.eq.f32.partialorder %v623, 0.0
      %v726 = vand.u32 %v623, 2147483648
      %v727 = vsel %vm725, %v726, %v724
      %v728 = vrsqrt.pop %v624
      %v729 = vmul.f32 %v728, %v624
      %v730 = vmul.f32 %v729, %v728
      %v731 = vmul.f32 0.5, %v730
      %v732 = vsub.f32 1.5, %v731
      %v733 = vmul.f32 %v728, %v732
      %v734 = vmul.f32 %v624, %v733
      %vm735 = vcmp.eq.f32.partialorder %v624, inf
      %v736 = vsel %vm735, %v624, %v734
      %vm737 = vcmp.eq.f32.partialorder %v624, 0.0
      %v738 = vand.u32 %v624, 2147483648
      %v739 = vsel %vm737, %v738, %v736
      %v740 = vrsqrt.pop %v625
      %v741 = vmul.f32 %v740, %v625
      %v742 = vmul.f32 %v741, %v740
      %v743 = vmul.f32 0.5, %v742
      %v744 = vsub.f32 1.5, %v743
      %v745 = vmul.f32 %v740, %v744
      %v746 = vmul.f32 %v625, %v745
      %vm747 = vcmp.eq.f32.partialorder %v625, inf
      %v748 = vsel %vm747, %v625, %v746
      %vm749 = vcmp.eq.f32.partialorder %v625, 0.0
      %v750 = vand.u32 %v625, 2147483648
      %v751 = vsel %vm749, %v750, %v748
      %v752 = vrsqrt.pop %v626
      %v753 = vmul.f32 %v752, %v626
      %v754 = vmul.f32 %v753, %v752
      %v755 = vmul.f32 0.5, %v754
      %v756 = vsub.f32 1.5, %v755
      %v757 = vmul.f32 %v752, %v756
      %v758 = vmul.f32 %v626, %v757
      %vm759 = vcmp.eq.f32.partialorder %v626, inf
      %v760 = vsel %vm759, %v626, %v758
      %vm761 = vcmp.eq.f32.partialorder %v626, 0.0
      %v762 = vand.u32 %v626, 2147483648
      %v763 = vsel %vm761, %v762, %v760
      %v764 = vrsqrt.pop %v627
      %v765 = vmul.f32 %v764, %v627
      %v766 = vmul.f32 %v765, %v764
      %v767 = vmul.f32 0.5, %v766
      %v768 = vsub.f32 1.5, %v767
      %v769 = vmul.f32 %v764, %v768
      %v770 = vmul.f32 %v627, %v769
      %vm771 = vcmp.eq.f32.partialorder %v627, inf
      %v772 = vsel %vm771, %v627, %v770
      %vm773 = vcmp.eq.f32.partialorder %v627, 0.0
      %v774 = vand.u32 %v627, 2147483648
      %v775 = vsel %vm773, %v774, %v772
      %v776 = vrsqrt.pop %v628
      %v777 = vmul.f32 %v776, %v628
      %v778 = vmul.f32 %v777, %v776
      %v779 = vmul.f32 0.5, %v778
      %v780 = vsub.f32 1.5, %v779
      %v781 = vmul.f32 %v776, %v780
      %v782 = vmul.f32 %v628, %v781
      %vm783 = vcmp.eq.f32.partialorder %v628, inf
      %v784 = vsel %vm783, %v628, %v782
      %vm785 = vcmp.eq.f32.partialorder %v628, 0.0
      %v786 = vand.u32 %v628, 2147483648
      %v787 = vsel %vm785, %v786, %v784
      %v788 = vrsqrt.pop %v629
      %v789 = vmul.f32 %v788, %v629
      %v790 = vmul.f32 %v789, %v788
      %v791 = vmul.f32 0.5, %v790
      %v792 = vsub.f32 1.5, %v791
      %v793 = vmul.f32 %v788, %v792
      %v794 = vmul.f32 %v629, %v793
      %vm795 = vcmp.eq.f32.partialorder %v629, inf
      %v796 = vsel %vm795, %v629, %v794
      %vm797 = vcmp.eq.f32.partialorder %v629, 0.0
      %v798 = vand.u32 %v629, 2147483648
      %v799 = vsel %vm797, %v798, %v796
      %v800 = vrsqrt.pop %v630
      %v801 = vmul.f32 %v800, %v630
      %v802 = vmul.f32 %v801, %v800
      %v803 = vmul.f32 0.5, %v802
      %v804 = vsub.f32 1.5, %v803
      %v805 = vmul.f32 %v800, %v804
      %v806 = vmul.f32 %v630, %v805
      %vm807 = vcmp.eq.f32.partialorder %v630, inf
      %v808 = vsel %vm807, %v630, %v806
      %vm809 = vcmp.eq.f32.partialorder %v630, 0.0
      %v810 = vand.u32 %v630, 2147483648
      %v811 = vsel %vm809, %v810, %v808
      %v812 = vrsqrt.pop %v631
      %v813 = vmul.f32 %v812, %v631
      %v814 = vmul.f32 %v813, %v812
      %v815 = vmul.f32 0.5, %v814
      %v816 = vsub.f32 1.5, %v815
      %v817 = vmul.f32 %v812, %v816
      %v818 = vmul.f32 %v631, %v817
      %vm819 = vcmp.eq.f32.partialorder %v631, inf
      %v820 = vsel %vm819, %v631, %v818
      %vm821 = vcmp.eq.f32.partialorder %v631, 0.0
      %v822 = vand.u32 %v631, 2147483648
      %v823 = vsel %vm821, %v822, %v820
      %v824 = vld [vmem:[#allocation3] sm:$0xff]
      %v825 = vld [vmem:[#allocation3 + $0x8] sm:$0xff]
      %v826 = vld [vmem:[#allocation3 + $0x10] sm:$0xff]
      %v827 = vld [vmem:[#allocation3 + $0x18] sm:$0xff]
      %v828 = vld [vmem:[#allocation3 + $0x20] sm:$0xff]
      %v829 = vld [vmem:[#allocation3 + $0x28] sm:$0xff]
      %v830 = vld [vmem:[#allocation3 + $0x30] sm:$0xff]
      %v831 = vld [vmem:[#allocation3 + $0x38] sm:$0xff]
      %v832 = vld [vmem:[#allocation3 + $0x40] sm:$0xff]
      %v833 = vld [vmem:[#allocation3 + $0x48] sm:$0xff]
      %v834 = vld [vmem:[#allocation3 + $0x50] sm:$0xff]
      %v835 = vld [vmem:[#allocation3 + $0x58] sm:$0xff]
      %v836 = vld [vmem:[#allocation3 + $0x60] sm:$0xff]
      %v837 = vld [vmem:[#allocation3 + $0x68] sm:$0xff]
      %v838 = vld [vmem:[#allocation3 + $0x70] sm:$0xff]
      %v839 = vld [vmem:[#allocation3 + $0x78] sm:$0xff]
      %v840 = vmax.f32 %v824, 1e-16
      %v841 = vmax.f32 %v825, 1e-16
      %v842 = vmax.f32 %v826, 1e-16
      %v843 = vmax.f32 %v827, 1e-16
      %v844 = vmax.f32 %v828, 1e-16
      %v845 = vmax.f32 %v829, 1e-16
      %v846 = vmax.f32 %v830, 1e-16
      %v847 = vmax.f32 %v831, 1e-16
      %v848 = vmax.f32 %v832, 1e-16
      %v849 = vmax.f32 %v833, 1e-16
      %v850 = vmax.f32 %v834, 1e-16
      %v851 = vmax.f32 %v835, 1e-16
      %v852 = vmax.f32 %v836, 1e-16
      %v853 = vmax.f32 %v837, 1e-16
      %v854 = vmax.f32 %v838, 1e-16
      %v855 = vmax.f32 %v839, 1e-16
      %v856 = vrsqrt.pop %v840
      %v857 = vmul.f32 %v856, %v840
      %v858 = vmul.f32 %v857, %v856
      %v859 = vmul.f32 0.5, %v858
      %v860 = vsub.f32 1.5, %v859
      %v861 = vmul.f32 %v856, %v860
      %v862 = vmul.f32 %v840, %v861
      %vm863 = vcmp.eq.f32.partialorder %v840, inf
      %v864 = vsel %vm863, %v840, %v862
      %vm865 = vcmp.eq.f32.partialorder %v840, 0.0
      %v866 = vand.u32 %v840, 2147483648
      %v867 = vsel %vm865, %v866, %v864
      %v868 = vrsqrt.pop %v841
      %v869 = vmul.f32 %v868, %v841
      %v870 = vmul.f32 %v869, %v868
      %v871 = vmul.f32 0.5, %v870
      %v872 = vsub.f32 1.5, %v871
      %v873 = vmul.f32 %v868, %v872
      %v874 = vmul.f32 %v841, %v873
      %vm875 = vcmp.eq.f32.partialorder %v841, inf
      %v876 = vsel %vm875, %v841, %v874
      %vm877 = vcmp.eq.f32.partialorder %v841, 0.0
      %v878 = vand.u32 %v841, 2147483648
      %v879 = vsel %vm877, %v878, %v876
      %v880 = vrsqrt.pop %v842
      %v881 = vmul.f32 %v880, %v842
      %v882 = vmul.f32 %v881, %v880
      %v883 = vmul.f32 0.5, %v882
      %v884 = vsub.f32 1.5, %v883
      %v885 = vmul.f32 %v880, %v884
      %v886 = vmul.f32 %v842, %v885
      %vm887 = vcmp.eq.f32.partialorder %v842, inf
      %v888 = vsel %vm887, %v842, %v886
      %vm889 = vcmp.eq.f32.partialorder %v842, 0.0
      %v890 = vand.u32 %v842, 2147483648
      %v891 = vsel %vm889, %v890, %v888
      %v892 = vrsqrt.pop %v843
      %v893 = vmul.f32 %v892, %v843
      %v894 = vmul.f32 %v893, %v892
      %v895 = vmul.f32 0.5, %v894
      %v896 = vsub.f32 1.5, %v895
      %v897 = vmul.f32 %v892, %v896
      %v898 = vmul.f32 %v843, %v897
      %vm899 = vcmp.eq.f32.partialorder %v843, inf
      %v900 = vsel %vm899, %v843, %v898
      %vm901 = vcmp.eq.f32.partialorder %v843, 0.0
      %v902 = vand.u32 %v843, 2147483648
      %v903 = vsel %vm901, %v902, %v900
      %v904 = vrsqrt.pop %v844
      %v905 = vmul.f32 %v904, %v844
      %v906 = vmul.f32 %v905, %v904
      %v907 = vmul.f32 0.5, %v906
      %v908 = vsub.f32 1.5, %v907
      %v909 = vmul.f32 %v904, %v908
      %v910 = vmul.f32 %v844, %v909
      %vm911 = vcmp.eq.f32.partialorder %v844, inf
      %v912 = vsel %vm911, %v844, %v910
      %vm913 = vcmp.eq.f32.partialorder %v844, 0.0
      %v914 = vand.u32 %v844, 2147483648
      %v915 = vsel %vm913, %v914, %v912
      %v916 = vrsqrt.pop %v845
      %v917 = vmul.f32 %v916, %v845
      %v918 = vmul.f32 %v917, %v916
      %v919 = vmul.f32 0.5, %v918
      %v920 = vsub.f32 1.5, %v919
      %v921 = vmul.f32 %v916, %v920
      %v922 = vmul.f32 %v845, %v921
      %vm923 = vcmp.eq.f32.partialorder %v845, inf
      %v924 = vsel %vm923, %v845, %v922
      %vm925 = vcmp.eq.f32.partialorder %v845, 0.0
      %v926 = vand.u32 %v845, 2147483648
      %v927 = vsel %vm925, %v926, %v924
      %v928 = vrsqrt.pop %v846
      %v929 = vmul.f32 %v928, %v846
      %v930 = vmul.f32 %v929, %v928
      %v931 = vmul.f32 0.5, %v930
      %v932 = vsub.f32 1.5, %v931
      %v933 = vmul.f32 %v928, %v932
      %v934 = vmul.f32 %v846, %v933
      %vm935 = vcmp.eq.f32.partialorder %v846, inf
      %v936 = vsel %vm935, %v846, %v934
      %vm937 = vcmp.eq.f32.partialorder %v846, 0.0
      %v938 = vand.u32 %v846, 2147483648
      %v939 = vsel %vm937, %v938, %v936
      %v940 = vrsqrt.pop %v847
      %v941 = vmul.f32 %v940, %v847
      %v942 = vmul.f32 %v941, %v940
      %v943 = vmul.f32 0.5, %v942
      %v944 = vsub.f32 1.5, %v943
      %v945 = vmul.f32 %v940, %v944
      %v946 = vmul.f32 %v847, %v945
      %vm947 = vcmp.eq.f32.partialorder %v847, inf
      %v948 = vsel %vm947, %v847, %v946
      %vm949 = vcmp.eq.f32.partialorder %v847, 0.0
      %v950 = vand.u32 %v847, 2147483648
      %v951 = vsel %vm949, %v950, %v948
      %v952 = vrsqrt.pop %v848
      %v953 = vmul.f32 %v952, %v848
      %v954 = vmul.f32 %v953, %v952
      %v955 = vmul.f32 0.5, %v954
      %v956 = vsub.f32 1.5, %v955
      %v957 = vmul.f32 %v952, %v956
      %v958 = vmul.f32 %v848, %v957
      %vm959 = vcmp.eq.f32.partialorder %v848, inf
      %v960 = vsel %vm959, %v848, %v958
      %vm961 = vcmp.eq.f32.partialorder %v848, 0.0
      %v962 = vand.u32 %v848, 2147483648
      %v963 = vsel %vm961, %v962, %v960
      %v964 = vrsqrt.pop %v849
      %v965 = vmul.f32 %v964, %v849
      %v966 = vmul.f32 %v965, %v964
      %v967 = vmul.f32 0.5, %v966
      %v968 = vsub.f32 1.5, %v967
      %v969 = vmul.f32 %v964, %v968
      %v970 = vmul.f32 %v849, %v969
      %vm971 = vcmp.eq.f32.partialorder %v849, inf
      %v972 = vsel %vm971, %v849, %v970
      %vm973 = vcmp.eq.f32.partialorder %v849, 0.0
      %v974 = vand.u32 %v849, 2147483648
      %v975 = vsel %vm973, %v974, %v972
      %v976 = vrsqrt.pop %v850
      %v977 = vmul.f32 %v976, %v850
      %v978 = vmul.f32 %v977, %v976
      %v979 = vmul.f32 0.5, %v978
      %v980 = vsub.f32 1.5, %v979
      %v981 = vmul.f32 %v976, %v980
      %v982 = vmul.f32 %v850, %v981
      %vm983 = vcmp.eq.f32.partialorder %v850, inf
      %v984 = vsel %vm983, %v850, %v982
      %vm985 = vcmp.eq.f32.partialorder %v850, 0.0
      %v986 = vand.u32 %v850, 2147483648
      %v987 = vsel %vm985, %v986, %v984
      %v988 = vrsqrt.pop %v851
      %v989 = vmul.f32 %v988, %v851
      %v990 = vmul.f32 %v989, %v988
      %v991 = vmul.f32 0.5, %v990
      %v992 = vsub.f32 1.5, %v991
      %v993 = vmul.f32 %v988, %v992
      %v994 = vmul.f32 %v851, %v993
      %vm995 = vcmp.eq.f32.partialorder %v851, inf
      %v996 = vsel %vm995, %v851, %v994
      %vm997 = vcmp.eq.f32.partialorder %v851, 0.0
      %v998 = vand.u32 %v851, 2147483648
      %v999 = vsel %vm997, %v998, %v996
      %v1000 = vrsqrt.pop %v852
      %v1001 = vmul.f32 %v1000, %v852
      %v1002 = vmul.f32 %v1001, %v1000
      %v1003 = vmul.f32 0.5, %v1002
      %v1004 = vsub.f32 1.5, %v1003
      %v1005 = vmul.f32 %v1000, %v1004
      %v1006 = vmul.f32 %v852, %v1005
      %vm1007 = vcmp.eq.f32.partialorder %v852, inf
      %v1008 = vsel %vm1007, %v852, %v1006
      %vm1009 = vcmp.eq.f32.partialorder %v852, 0.0
      %v1010 = vand.u32 %v852, 2147483648
      %v1011 = vsel %vm1009, %v1010, %v1008
      %v1012 = vrsqrt.pop %v853
      %v1013 = vmul.f32 %v1012, %v853
      %v1014 = vmul.f32 %v1013, %v1012
      %v1015 = vmul.f32 0.5, %v1014
      %v1016 = vsub.f32 1.5, %v1015
      %v1017 = vmul.f32 %v1012, %v1016
      %v1018 = vmul.f32 %v853, %v1017
      %vm1019 = vcmp.eq.f32.partialorder %v853, inf
      %v1020 = vsel %vm1019, %v853, %v1018
      %vm1021 = vcmp.eq.f32.partialorder %v853, 0.0
      %v1022 = vand.u32 %v853, 2147483648
      %v1023 = vsel %vm1021, %v1022, %v1020
      %v1024 = vrsqrt.pop %v854
      %v1025 = vmul.f32 %v1024, %v854
      %v1026 = vmul.f32 %v1025, %v1024
      %v1027 = vmul.f32 0.5, %v1026
      %v1028 = vsub.f32 1.5, %v1027
      %v1029 = vmul.f32 %v1024, %v1028
      %v1030 = vmul.f32 %v854, %v1029
      %vm1031 = vcmp.eq.f32.partialorder %v854, inf
      %v1032 = vsel %vm1031, %v854, %v1030
      %vm1033 = vcmp.eq.f32.partialorder %v854, 0.0
      %v1034 = vand.u32 %v854, 2147483648
      %v1035 = vsel %vm1033, %v1034, %v1032
      %v1036 = vrsqrt.pop %v855
      %v1037 = vmul.f32 %v1036, %v855
      %v1038 = vmul.f32 %v1037, %v1036
      %v1039 = vmul.f32 0.5, %v1038
      %v1040 = vsub.f32 1.5, %v1039
      %v1041 = vmul.f32 %v1036, %v1040
      %v1042 = vmul.f32 %v855, %v1041
      %vm1043 = vcmp.eq.f32.partialorder %v855, inf
      %v1044 = vsel %vm1043, %v855, %v1042
      %vm1045 = vcmp.eq.f32.partialorder %v855, 0.0
      %v1046 = vand.u32 %v855, 2147483648
      %v1047 = vsel %vm1045, %v1046, %v1044
      %v1048 = vsub.f32 %v643, %v867
      %v1049 = vsub.f32 %v655, %v879
      %v1050 = vsub.f32 %v667, %v891
      %v1051 = vsub.f32 %v679, %v903
      %v1052 = vsub.f32 %v691, %v915
      %v1053 = vsub.f32 %v703, %v927
      %v1054 = vsub.f32 %v715, %v939
      %v1055 = vsub.f32 %v727, %v951
      %v1056 = vsub.f32 %v739, %v963
      %v1057 = vsub.f32 %v751, %v975
      %v1058 = vsub.f32 %v763, %v987
      %v1059 = vsub.f32 %v775, %v999
      %v1060 = vsub.f32 %v787, %v1011
      %v1061 = vsub.f32 %v799, %v1023
      %v1062 = vsub.f32 %v811, %v1035
      %v1063 = vsub.f32 %v823, %v1047
      %v1064 = vadd.f32 %v1048, 0.0
      %v1065 = vadd.f32 %v1049, 0.0
      %v1066 = vadd.f32 %v1050, 0.0
      %v1067 = vadd.f32 %v1051, 0.0
      %v1068 = vadd.f32 %v1052, 0.0
      %v1069 = vadd.f32 %v1053, 0.0
      %v1070 = vadd.f32 %v1054, 0.0
      %v1071 = vadd.f32 %v1055, 0.0
      %v1072 = vadd.f32 %v1056, 0.0
      %v1073 = vadd.f32 %v1057, 0.0
      %v1074 = vadd.f32 %v1058, 0.0
      %v1075 = vadd.f32 %v1059, 0.0
      %v1076 = vadd.f32 %v1060, 0.0
      %v1077 = vadd.f32 %v1061, 0.0
      %v1078 = vadd.f32 %v1062, 0.0
      %v1079 = vadd.f32 %v1063, 0.0
      %v1080 = vmax.f32 %v1064, 0.0
      %v1081 = vmax.f32 %v1065, 0.0
      %v1082 = vmax.f32 %v1066, 0.0
      %v1083 = vmax.f32 %v1067, 0.0
      %v1084 = vmax.f32 %v1068, 0.0
      %v1085 = vmax.f32 %v1069, 0.0
      %v1086 = vmax.f32 %v1070, 0.0
      %v1087 = vmax.f32 %v1071, 0.0
      %v1088 = vmax.f32 %v1072, 0.0
      %v1089 = vmax.f32 %v1073, 0.0
      %v1090 = vmax.f32 %v1074, 0.0
      %v1091 = vmax.f32 %v1075, 0.0
      %v1092 = vmax.f32 %v1076, 0.0
      %v1093 = vmax.f32 %v1077, 0.0
      %v1094 = vmax.f32 %v1078, 0.0
      %v1095 = vmax.f32 %v1079, 0.0
      %s1096 = smul.u32 0, 128
      %v1097 = vlaneseq
      %v1098 = vshrl.u32 %v1097, 7
      %v1099 = vadd.s32 %v1098, 8
      %v1100 = vadd.s32 %v1098, 16
      %v1101 = vadd.s32 %v1098, 24
      %v1102 = vadd.s32 %v1098, 32
      %v1103 = vadd.s32 %v1098, 40
      %v1104 = vadd.s32 %v1098, 48
      %v1105 = vadd.s32 %v1098, 56
      %v1106 = vadd.s32 %v1098, 64
      %v1107 = vadd.s32 %v1098, 72
      %v1108 = vadd.s32 %v1098, 80
      %v1109 = vadd.s32 %v1098, 88
      %v1110 = vadd.s32 %v1098, 96
      %v1111 = vadd.s32 %v1098, 104
      %v1112 = vadd.s32 %v1098, 112
      %v1113 = vadd.s32 %v1098, 120
      %v1114 = vstv %s1096
      %v1115 = vadd.s32 %v1114, %v1098
      %v1116 = vadd.s32 %v1114, %v1099
      %v1117 = vadd.s32 %v1114, %v1100
      %v1118 = vadd.s32 %v1114, %v1101
      %v1119 = vadd.s32 %v1114, %v1102
      %v1120 = vadd.s32 %v1114, %v1103
      %v1121 = vadd.s32 %v1114, %v1104
      %v1122 = vadd.s32 %v1114, %v1105
      %v1123 = vadd.s32 %v1114, %v1106
      %v1124 = vadd.s32 %v1114, %v1107
      %v1125 = vadd.s32 %v1114, %v1108
      %v1126 = vadd.s32 %v1114, %v1109
      %v1127 = vadd.s32 %v1114, %v1110
      %v1128 = vadd.s32 %v1114, %v1111
      %v1129 = vadd.s32 %v1114, %v1112
      %v1130 = vadd.s32 %v1114, %v1113
      %vm1131 = vcmp.lt.s32.totalorder %v1115, 8
      %vm1132 = vcmp.lt.s32.totalorder %v1116, 8
      %vm1133 = vcmp.lt.s32.totalorder %v1117, 8
      %vm1134 = vcmp.lt.s32.totalorder %v1118, 8
      %vm1135 = vcmp.lt.s32.totalorder %v1119, 8
      %vm1136 = vcmp.lt.s32.totalorder %v1120, 8
      %vm1137 = vcmp.lt.s32.totalorder %v1121, 8
      %vm1138 = vcmp.lt.s32.totalorder %v1122, 8
      %vm1139 = vcmp.lt.s32.totalorder %v1123, 8
      %vm1140 = vcmp.lt.s32.totalorder %v1124, 8
      %vm1141 = vcmp.lt.s32.totalorder %v1125, 8
      %vm1142 = vcmp.lt.s32.totalorder %v1126, 8
      %vm1143 = vcmp.lt.s32.totalorder %v1127, 8
      %vm1144 = vcmp.lt.s32.totalorder %v1128, 8
      %vm1145 = vcmp.lt.s32.totalorder %v1129, 8
      %vm1146 = vcmp.lt.s32.totalorder %v1130, 8
      %v1147 = vsel %vm1131, %v1080, 0.0
      %v1148 = vsel %vm1132, %v1081, 0.0
      %v1149 = vsel %vm1133, %v1082, 0.0
      %v1150 = vsel %vm1134, %v1083, 0.0
      %v1151 = vsel %vm1135, %v1084, 0.0
      %v1152 = vsel %vm1136, %v1085, 0.0
      %v1153 = vsel %vm1137, %v1086, 0.0
      %v1154 = vsel %vm1138, %v1087, 0.0
      %v1155 = vsel %vm1139, %v1088, 0.0
      %v1156 = vsel %vm1140, %v1089, 0.0
      %v1157 = vsel %vm1141, %v1090, 0.0
      %v1158 = vsel %vm1142, %v1091, 0.0
      %v1159 = vsel %vm1143, %v1092, 0.0
      %v1160 = vsel %vm1144, %v1093, 0.0
      %v1161 = vsel %vm1145, %v1094, 0.0
      %v1162 = vsel %vm1146, %v1095, 0.0
      %v1163 = vsel %vm500, %v1147, 0.0
      %v1164 = vsel %vm500, %v1148, 0.0
      %v1165 = vadd.f32 %v1163, %v1164
      %v1166 = vsel %vm500, %v1149, 0.0
      %v1167 = vadd.f32 %v1165, %v1166
      %v1168 = vsel %vm500, %v1150, 0.0
      %v1169 = vadd.f32 %v1167, %v1168
      %v1170 = vsel %vm500, %v1151, 0.0
      %v1171 = vadd.f32 %v1169, %v1170
      %v1172 = vsel %vm500, %v1152, 0.0
      %v1173 = vadd.f32 %v1171, %v1172
      %v1174 = vsel %vm500, %v1153, 0.0
      %v1175 = vadd.f32 %v1173, %v1174
      %v1176 = vsel %vm500, %v1154, 0.0
      %v1177 = vadd.f32 %v1175, %v1176
      %v1178 = vsel %vm500, %v1155, 0.0
      %v1179 = vadd.f32 %v1177, %v1178
      %v1180 = vsel %vm500, %v1156, 0.0
      %v1181 = vadd.f32 %v1179, %v1180
      %v1182 = vsel %vm500, %v1157, 0.0
      %v1183 = vadd.f32 %v1181, %v1182
      %v1184 = vsel %vm500, %v1158, 0.0
      %v1185 = vadd.f32 %v1183, %v1184
      %v1186 = vsel %vm500, %v1159, 0.0
      %v1187 = vadd.f32 %v1185, %v1186
      %v1188 = vsel %vm500, %v1160, 0.0
      %v1189 = vadd.f32 %v1187, %v1188
      %v1190 = vsel %vm500, %v1161, 0.0
      %v1191 = vadd.f32 %v1189, %v1190
      %v1192 = vsel %vm500, %v1162, 0.0
      %v1193 = vadd.f32 %v1191, %v1192
      %1194 = vadd.xlane.f32.xlu0 %v1193
      %v1195 = vpop.xlane.xlu0 %1194
      %v1196 = vrot.slane %v1195, 4
      %v1197 = vadd.f32 %v1195, %v1196
      %v1198 = vrot.slane %v1197, 2
      %v1199 = vadd.f32 %v1197, %v1198
      %v1200 = vrot.slane %v1199, 1
      %v1201 = vadd.f32 %v1199, %v1200
      %s1202 = vtos %v1201
      %s1203 = scalar_lea.smem [#allocation4], 0
      %1204 = sst [smem:[%s1203]] %s1202
    $region33: #{tpu_custom_call.1} parent=1 // pred_fallthru
      _
    // Predicated region
    $region34: #{tpu_custom_call.1} parent=1 // pred_check
      _
    $region35: #{tpu_custom_call.1} parent=1 // pred_check_branch
      %1206 = sbr.rel (0) target = $region37
    $region36: #{tpu_custom_call.1} parent=1 // pred_region
      %1208 = vsyncadd [#allocation5], 0
      %s1210 = sshll.u32 %s6, 4
      %s1211 = int_to_ptr.hbm [resolvable:$true] %s1210
      %1213 = dma.smem_to_hbm [#allocation4], 16, %s1211, [#allocation5]
    $region37: #{tpu_custom_call.1} parent=1 // pred_fallthru
      _
    // Predicated region
    $region38: #{tpu_custom_call.1} parent=1 // pred_check
      _
    $region39: #{tpu_custom_call.1} parent=1 // pred_check_branch
      %1215 = sbr.rel (0) target = $region41
    $region40: #{tpu_custom_call.1} parent=1 // pred_region
      %1217 = dma.done [#allocation5], 16
    $region41: #{tpu_custom_call.1} parent=1 // pred_fallthru
      _
    %1218 = sfence
    %1219 = vsyncpa [#allocation5], 1

</llo_original>
